<compile_context>
chip_gen: v6e
topology: v6e:2x2x1
jax: 0.10.0
libtpu: 0.0.40
codegen_flags: <defaults>
</compile_context>

<pallas_src>
import jax
import jax.numpy as jnp
from jax import lax
from jax.experimental import pallas as pl
from jax.experimental.pallas import tpu as pltpu


# ---------------------------------------------------------------------------
# Kernels  (grid = (batch tiles, out tiles, K-reduction tiles))
# ---------------------------------------------------------------------------
def _noisy_linear_train_kernel(x_ref, wmu_ref, wsig_ref, ein_ref, eout_ref,
                               bmu_ref, bsig_ref, o_ref, mu_acc, sig_acc):
    k = pl.program_id(2)

    x = x_ref[...]                                   # (tb, tk) compute dtype
    ein = ein_ref[...]                               # (1, tk)  compute dtype

    # Rank-1 noise kept factored: two MXU matmuls, f32 accumulation.
    mu_part = jnp.dot(x, wmu_ref[...], preferred_element_type=jnp.float32)
    sig_part = jnp.dot(x * ein, wsig_ref[...],
                       preferred_element_type=jnp.float32)

    @pl.when(k == 0)
    def _():                                         # init with first partial
        mu_acc[...] = mu_part
        sig_acc[...] = sig_part

    @pl.when(k > 0)
    def _():
        mu_acc[...] += mu_part
        sig_acc[...] += sig_part

    @pl.when(k == pl.num_programs(2) - 1)
    def _():                                         # eps_out scale applied once
        eout = eout_ref[...].astype(jnp.float32)     # (1, tn)
        bias = (bmu_ref[...].astype(jnp.float32)
                + bsig_ref[...].astype(jnp.float32) * eout)
        o_ref[...] = (mu_acc[...] + sig_acc[...] * eout + bias
                      ).astype(o_ref.dtype)


def _noisy_linear_eval_kernel(x_ref, wmu_ref, bmu_ref, o_ref, acc_ref):
    k = pl.program_id(2)
    part = jnp.dot(x_ref[...], wmu_ref[...],
                   preferred_element_type=jnp.float32)

    @pl.when(k == 0)
    def _():
        acc_ref[...] = part

    @pl.when(k > 0)
    def _():
        acc_ref[...] += part

    @pl.when(k == pl.num_programs(2) - 1)
    def _():
        o_ref[...] = (acc_ref[...] + bmu_ref[...].astype(jnp.float32)
                      ).astype(o_ref.dtype)


# ---------------------------------------------------------------------------
# Helpers
# ---------------------------------------------------------------------------
def _round_up(x, m):
    return ((x + m - 1) // m) * m


def _pad_axis(a, axis, new_size):
    pad = new_size - a.shape[axis]
    if pad == 0:
        return a
    widths = [(0, 0)] * a.ndim
    widths[axis] = (0, pad)
    return jnp.pad(a, widths)


def _choose_tile(dim, max_tile):
    """Return (tile, padded_dim): padded_dim is a multiple of tile.

    Small/medium dims become one full-width tile (no degenerate 128-wide
    tiles); large dims use max_tile and are padded up to a multiple of it.
    """
    dim128 = _round_up(dim, 128)
    if dim128 <= max_tile:
        return dim128, dim128
    return max_tile, _round_up(dim, max_tile)


def _vmem_limit_bytes(vmem_need):
    # Generation-aware cap: ~75% of physical VMEM (48 MiB on v7x's 64 MiB,
    # 96 MiB on v5e/v6e's 128 MiB) -> headroom for compiler internal scratch.
    try:
        phys = int(pltpu.get_tpu_info().vmem_capacity_bytes)
    except Exception:
        phys = 64 << 20  # conservative fallback (v7x-sized)
    cap = (phys * 3) // 4
    return int(min(cap, max(32 << 20, 2 * int(vmem_need))))


# ---------------------------------------------------------------------------
# Python wrapper
# ---------------------------------------------------------------------------
def noisy_linear_forward(x, weight_mu_t, weight_sigma_t, eps_in, eps_out,
                         bias_mu, bias_sigma, *, training=True,
                         compute_dtype=jnp.bfloat16,
                         max_tile_n=1024, max_tile_k=None):
    """NoisyLinear forward pass (matches the PyTorch module semantics).

    Args:
      x:              (B, in_features)
      weight_mu_t:    (in_features, out_features)  == PyTorch weight_mu.T
      weight_sigma_t: (in_features, out_features)  == PyTorch weight_sigma.T
      eps_in:         (in_features,)   factored noise
                      (weight_epsilon = outer(eps_out, eps_in))
      eps_out:        (out_features,)  factored noise (== bias_epsilon)
      bias_mu, bias_sigma: (out_features,)
      compute_dtype:  dtype used for x / weights on the MXU (default bf16;
                      accumulation is always f32).  Pass jnp.float32 for an
                      exact-match path.
    Returns:
      (B, out_features) == F.linear(x, mu + sigma*eps, b_mu + b_sigma*b_eps)
      in training mode, F.linear(x, mu, b_mu) in eval mode.  Output dtype
      matches x.dtype.
    """
    B, in_features = x.shape
    in_w, out_features = weight_mu_t.shape
    assert in_w == in_features

    out_dtype = x.dtype
    cdt = jnp.dtype(compute_dtype) if compute_dtype is not None else x.dtype
    if max_tile_k is None:
        max_tile_k = 2048 if cdt == jnp.dtype(jnp.bfloat16) else 1024

    # Batch tiling: bounds VMEM at large B (64 MiB on v7x) and adds a second
    # parallel grid axis.
    if B <= 256:
        b_pad = _round_up(B, 8)
        tb = b_pad
    else:
        tb = 256
        b_pad = _round_up(B, tb)

    tk, k_pad = _choose_tile(in_features, max_tile_k)
    tn, n_pad = _choose_tile(out_features, max_tile_n)
    # v7x has 2 TensorCores; the parallel out-axis is what the runtime shards
    # across them -> prefer >= 2 output tiles whenever tn can still shrink.
    while n_pad // tn < 2 and tn > 128:
        tn = max(128, _round_up(tn // 2, 128))
        n_pad = _round_up(out_features, tn)

    grid = (b_pad // tb, n_pad // tn, k_pad // tk)

    # Zero padding is exact: padded K columns contribute 0 to the matmuls,
    # padded N columns / B rows are sliced away below.
    xp = _pad_axis(_pad_axis(x, 0, b_pad), 1, k_pad).astype(cdt)
    wmu = _pad_axis(_pad_axis(weight_mu_t, 0, k_pad), 1, n_pad).astype(cdt)
    bmu = _pad_axis(bias_mu.reshape(1, -1).astype(jnp.float32), 1, n_pad)

    x_spec = pl.BlockSpec((tb, tk), lambda b, n, k: (b, k))
    w_spec = pl.BlockSpec((tk, tn), lambda b, n, k: (k, n))
    kvec_spec = pl.BlockSpec((1, tk), lambda b, n, k: (0, k))
    nvec_spec = pl.BlockSpec((1, tn), lambda b, n, k: (0, n))
    out_spec = pl.BlockSpec((tb, tn), lambda b, n, k: (b, n))

    cbytes = cdt.itemsize
    obytes = jnp.dtype(out_dtype).itemsize
    sems = ("parallel", "parallel", "arbitrary")

    if training:
        wsig = _pad_axis(_pad_axis(weight_sigma_t, 0, k_pad), 1,
                         n_pad).astype(cdt)
        ein = _pad_axis(eps_in.reshape(1, -1).astype(cdt), 1, k_pad)
        eout = _pad_axis(eps_out.reshape(1, -1).astype(jnp.float32), 1, n_pad)
        bsig = _pad_axis(bias_sigma.reshape(1, -1).astype(jnp.float32), 1,
                         n_pad)

        # double-buffered input blocks + output block + two f32 accumulators
        vmem_need = (2 * cbytes * (tb * tk + 2 * tk * tn + tk)
                     + 2 * 4 * 3 * tn
                     + 2 * obytes * tb * tn
                     + 2 * 4 * tb * tn)
        flops = (4 * b_pad * k_pad * n_pad          # two matmuls
                 + b_pad * k_pad                    # x * eps_in
                 + 4 * b_pad * n_pad)               # finalize elementwise
        bytes_accessed = (cbytes * (b_pad * k_pad + 2 * k_pad * n_pad + k_pad)
                          + 4 * 3 * n_pad + obytes * b_pad * n_pad)

        y = pl.pallas_call(
            _noisy_linear_train_kernel,
            out_shape=jax.ShapeDtypeStruct((b_pad, n_pad), out_dtype),
            grid_spec=pltpu.PrefetchScalarGridSpec(
                num_scalar_prefetch=0,
                grid=grid,
                in_specs=[x_spec, w_spec, w_spec, kvec_spec, nvec_spec,
                          nvec_spec, nvec_spec],
                out_specs=out_spec,
                scratch_shapes=[pltpu.VMEM((tb, tn), jnp.float32),
                                pltpu.VMEM((tb, tn), jnp.float32)]),
            compiler_params=pltpu.CompilerParams(
                dimension_semantics=sems,
                vmem_limit_bytes=_vmem_limit_bytes(vmem_need)),
            cost_estimate=pl.CostEstimate(
                flops=int(flops), transcendentals=0,
                bytes_accessed=int(bytes_accessed)),
        )(xp, wmu, wsig, ein, eout, bmu, bsig)
    else:
        # Eval mode: only DMA mu params (no sigma / epsilon traffic at all).
        vmem_need = (2 * cbytes * (tb * tk + tk * tn)
                     + 2 * 4 * tn
                     + 2 * obytes * tb * tn
                     + 4 * tb * tn)
        flops = 2 * b_pad * k_pad * n_pad + b_pad * n_pad
        bytes_accessed = (cbytes * (b_pad * k_pad + k_pad * n_pad)
                          + 4 * n_pad + obytes * b_pad * n_pad)

        y = pl.pallas_call(
            _noisy_linear_eval_kernel,
            out_shape=jax.ShapeDtypeStruct((b_pad, n_pad), out_dtype),
            grid_spec=pltpu.PrefetchScalarGridSpec(
                num_scalar_prefetch=0,
                grid=grid,
                in_specs=[x_spec, w_spec, nvec_spec],
                out_specs=out_spec,
                scratch_shapes=[pltpu.VMEM((tb, tn), jnp.float32)]),
            compiler_params=pltpu.CompilerParams(
                dimension_semantics=sems,
                vmem_limit_bytes=_vmem_limit_bytes(vmem_need)),
            cost_estimate=pl.CostEstimate(
                flops=int(flops), transcendentals=0,
                bytes_accessed=int(bytes_accessed)),
        )(xp, wmu, bmu)

    if b_pad != B or n_pad != out_features:
        y = y[:B, :out_features]
    return y


# ---------------------------------------------------------------------------
# Deterministic parameter / noise initialization (mirrors the PyTorch module,
# but stores weights transposed and keeps the noise in factored rank-1 form).
# reset_parameters / reset_noise are host-side state management, not kernel ops.
# ---------------------------------------------------------------------------
def init_noisy_linear_params(key, in_features, out_features, std_init=0.5):
    k_wmu, k_bmu, k_ein, k_eout = jax.random.split(key, 4)
    mu_range = 1.0 / jnp.sqrt(jnp.float32(in_features))

    weight_mu_t = jax.random.uniform(
        k_wmu, (in_features, out_features), jnp.float32, -mu_range, mu_range)
    weight_sigma_t = jnp.full((in_features, out_features),
                              std_init / jnp.sqrt(jnp.float32(in_features)),
                              jnp.float32)
    bias_mu = jax.random.uniform(
        k_bmu, (out_features,), jnp.float32, -mu_range, mu_range)
    bias_sigma = jnp.full((out_features,),
                          std_init / jnp.sqrt(jnp.float32(out_features)),
                          jnp.float32)

    def scale_noise(k, size):
        v = jax.random.normal(k, (size,), jnp.float32)
        return jnp.sign(v) * jnp.sqrt(jnp.abs(v))

    eps_in = scale_noise(k_ein, in_features)
    eps_out = scale_noise(k_eout, out_features)   # == bias_epsilon
    # weight_epsilon = outer(eps_out, eps_in) is intentionally never built.

    return dict(weight_mu_t=weight_mu_t, weight_sigma_t=weight_sigma_t,
                eps_in=eps_in, eps_out=eps_out,
                bias_mu=bias_mu, bias_sigma=bias_sigma)


# ---------------------------------------------------------------------------
if __name__ == "__main__":
    key = jax.random.PRNGKey(0)

    def reference(x, p, training):
        w_eff_t = p["weight_mu_t"]
        b_eff = p["bias_mu"]
        if training:
            w_eff_t = w_eff_t + p["weight_sigma_t"] * jnp.outer(p["eps_in"],
                                                                p["eps_out"])
            b_eff = b_eff + p["bias_sigma"] * p["eps_out"]
        return jnp.dot(x, w_eff_t, precision=lax.Precision.HIGHEST) + b_eff

    # --- 1) small DQN-ish shape, f32 compute path for a tight check ---------
    k_params, k_x, key = jax.random.split(key, 3)
    batch, in_features, out_features = 8, 32, 16
    params = init_noisy_linear_params(k_params, in_features, out_features)
    x = jax.random.normal(k_x, (batch, in_features), jnp.float32)

    args = (x, params["weight_mu_t"], params["weight_sigma_t"],
            params["eps_in"], params["eps_out"],
            params["bias_mu"], params["bias_sigma"])
    y_train = jax.block_until_ready(
        noisy_linear_forward(*args, training=True, compute_dtype=jnp.float32))
    y_eval = jax.block_until_ready(
        noisy_linear_forward(*args, training=False, compute_dtype=jnp.float32))

    assert y_train.shape == (batch, out_features)
    assert jnp.allclose(y_train, reference(x, params, True),
                        atol=1e-4, rtol=1e-4)
    assert jnp.allclose(y_eval, reference(x, params, False),
                        atol=1e-4, rtol=1e-4)

    # --- 2) exercises pad-to-tile, multi-step K reduction and >=2 out tiles --
    k_params2, k_x2, key = jax.random.split(key, 3)
    batch2, in2, out2 = 8, 640, 384
    params2 = init_noisy_linear_params(k_params2, in2, out2)
    x2 = jax.random.normal(k_x2, (batch2, in2), jnp.float32)
    y2 = jax.block_until_ready(
        noisy_linear_forward(x2, params2["weight_mu_t"],
                             params2["weight_sigma_t"],
                             params2["eps_in"], params2["eps_out"],
                             params2["bias_mu"], params2["bias_sigma"],
                             training=True, compute_dtype=jnp.float32,
                             max_tile_n=256, max_tile_k=256))
    assert y2.shape == (batch2, out2)
    assert jnp.allclose(y2, reference(x2, params2, True), atol=1e-3, rtol=1e-3)

    # --- 3) default bf16 compute path (halved weight HBM stream) ------------
    y3 = jax.block_until_ready(
        noisy_linear_forward(x2, params2["weight_mu_t"],
                             params2["weight_sigma_t"],
                             params2["eps_in"], params2["eps_out"],
                             params2["bias_mu"], params2["bias_sigma"],
                             training=True))
    ref3 = reference(x2, params2, True)
    assert y3.shape == (batch2, out2)
    rel_err = jnp.max(jnp.abs(y3 - ref3)) / (jnp.max(jnp.abs(ref3)) + 1e-6)
    assert rel_err < 5e-2, f"bf16 path error too large: {rel_err}"

    print("KERNEL_OK")
</pallas_src>

<mosaic_0001>
module attributes {stable_mosaic.version = 11 : i64} {
  func.func @_noisy_linear_train_kernel(%arg0: i32, %arg1: i32, %arg2: i32, %arg3: memref<8x128xf32, #tpu.memory_space<vmem>>, %arg4: memref<128x128xf32, #tpu.memory_space<vmem>>, %arg5: memref<128x128xf32, #tpu.memory_space<vmem>>, %arg6: memref<1x128xf32, #tpu.memory_space<vmem>>, %arg7: memref<1x128xf32, #tpu.memory_space<vmem>>, %arg8: memref<1x128xf32, #tpu.memory_space<vmem>>, %arg9: memref<1x128xf32, #tpu.memory_space<vmem>>, %arg10: memref<8x128xf32, #tpu.memory_space<vmem>>, %arg11: memref<8x128xf32, #tpu.memory_space<vmem>>, %arg12: memref<8x128xf32, #tpu.memory_space<vmem>>) attributes {dimension_semantics = [#tpu.dimension_semantics<parallel>, #tpu.dimension_semantics<parallel>, #tpu.dimension_semantics<arbitrary>], iteration_bounds = array<i64: 1, 1, 1>, scalar_prefetch = 0 : i64, scratch_operands = 2 : i64, tpu.core_type = #tpu.core_type<tc>, window_params = [{transform_indices = @transform_0, window_bounds = array<i64: 8, 128>}, {transform_indices = @transform_1, window_bounds = array<i64: 128, 128>}, {transform_indices = @transform_2, window_bounds = array<i64: 128, 128>}, {transform_indices = @transform_3, window_bounds = array<i64: 1, 128>}, {transform_indices = @transform_4, window_bounds = array<i64: 1, 128>}, {transform_indices = @transform_5, window_bounds = array<i64: 1, 128>}, {transform_indices = @transform_6, window_bounds = array<i64: 1, 128>}, {transform_indices = @transform_7, window_bounds = array<i64: 8, 128>}]} {
    %c0 = arith.constant 0 : index
    %c0_0 = arith.constant 0 : index
    %0 = vector.load %arg3[%c0, %c0_0] : memref<8x128xf32, #tpu.memory_space<vmem>>, vector<8x128xf32>
    %c0_1 = arith.constant 0 : index
    %c0_2 = arith.constant 0 : index
    %1 = vector.load %arg6[%c0_1, %c0_2] : memref<1x128xf32, #tpu.memory_space<vmem>>, vector<1x128xf32>
    %c0_3 = arith.constant 0 : index
    %c0_4 = arith.constant 0 : index
    %2 = vector.load %arg4[%c0_3, %c0_4] : memref<128x128xf32, #tpu.memory_space<vmem>>, vector<128x128xf32>
    %cst = arith.constant dense<0.000000e+00> : vector<8x128xf32>
    %3 = tpu.matmul %0, %2, %cst {dimension_numbers = #tpu.dot_dimension_numbers<[1], [0], [0], [1], [0, 0, 1, 1], [], []>} : vector<8x128xf32>, vector<128x128xf32>, vector<8x128xf32> -> vector<8x128xf32>
    %4 = vector.broadcast %1 : vector<1x128xf32> to vector<8x128xf32>
    %5 = arith.mulf %0, %4 : vector<8x128xf32>
    %c0_5 = arith.constant 0 : index
    %c0_6 = arith.constant 0 : index
    %6 = vector.load %arg5[%c0_5, %c0_6] : memref<128x128xf32, #tpu.memory_space<vmem>>, vector<128x128xf32>
    %cst_7 = arith.constant dense<0.000000e+00> : vector<8x128xf32>
    %7 = tpu.matmul %5, %6, %cst_7 {dimension_numbers = #tpu.dot_dimension_numbers<[1], [0], [0], [1], [0, 0, 1, 1], [], []>} : vector<8x128xf32>, vector<128x128xf32>, vector<8x128xf32> -> vector<8x128xf32>
    %c0_i32 = arith.constant 0 : i32
    %8 = arith.cmpi eq, %arg2, %c0_i32 : i32
    %9 = arith.extui %8 : i1 to i32
    %c0_i32_8 = arith.constant 0 : i32
    %10 = arith.cmpi ne, %9, %c0_i32_8 : i32
    scf.if %10 {
      %c0_13 = arith.constant 0 : index
      %c0_14 = arith.constant 0 : index
      %17 = vector.load %arg11[%c0_13, %c0_14] : memref<8x128xf32, #tpu.memory_space<vmem>>, vector<8x128xf32>
      tpu.vector_store %arg11[%c0_13, %c0_14], %3 {strides = array<i32>} : memref<8x128xf32, #tpu.memory_space<vmem>>, vector<8x128xf32>,
      %c0_15 = arith.constant 0 : index
      %c0_16 = arith.constant 0 : index
      %18 = vector.load %arg12[%c0_15, %c0_16] : memref<8x128xf32, #tpu.memory_space<vmem>>, vector<8x128xf32>
      tpu.vector_store %arg12[%c0_15, %c0_16], %7 {strides = array<i32>} : memref<8x128xf32, #tpu.memory_space<vmem>>, vector<8x128xf32>,
    } else {
    }
    %c0_i32_9 = arith.constant 0 : i32
    %11 = arith.cmpi sgt, %arg2, %c0_i32_9 : i32
    %12 = arith.extui %11 : i1 to i32
    %c0_i32_10 = arith.constant 0 : i32
    %13 = arith.cmpi ne, %12, %c0_i32_10 : i32
    scf.if %13 {
      %c0_13 = arith.constant 0 : index
      %c0_14 = arith.constant 0 : index
      %17 = vector.load %arg11[%c0_13, %c0_14] : memref<8x128xf32, #tpu.memory_space<vmem>>, vector<8x128xf32>
      %18 = arith.addf %17, %3 : vector<8x128xf32>
      %c0_15 = arith.constant 0 : index
      %c0_16 = arith.constant 0 : index
      %19 = vector.load %arg11[%c0_15, %c0_16] : memref<8x128xf32, #tpu.memory_space<vmem>>, vector<8x128xf32>
      tpu.vector_store %arg11[%c0_15, %c0_16], %18 {strides = array<i32>} : memref<8x128xf32, #tpu.memory_space<vmem>>, vector<8x128xf32>,
      %c0_17 = arith.constant 0 : index
      %c0_18 = arith.constant 0 : index
      %20 = vector.load %arg12[%c0_17, %c0_18] : memref<8x128xf32, #tpu.memory_space<vmem>>, vector<8x128xf32>
      %21 = arith.addf %20, %7 : vector<8x128xf32>
      %c0_19 = arith.constant 0 : index
      %c0_20 = arith.constant 0 : index
      %22 = vector.load %arg12[%c0_19, %c0_20] : memref<8x128xf32, #tpu.memory_space<vmem>>, vector<8x128xf32>
      tpu.vector_store %arg12[%c0_19, %c0_20], %21 {strides = array<i32>} : memref<8x128xf32, #tpu.memory_space<vmem>>, vector<8x128xf32>,
    } else {
    }
    %c0_i32_11 = arith.constant 0 : i32
    %14 = arith.cmpi eq, %arg2, %c0_i32_11 : i32
    %15 = arith.extui %14 : i1 to i32
    %c0_i32_12 = arith.constant 0 : i32
    %16 = arith.cmpi ne, %15, %c0_i32_12 : i32
    scf.if %16 {
      %c0_13 = arith.constant 0 : index
      %c0_14 = arith.constant 0 : index
      %17 = vector.load %arg7[%c0_13, %c0_14] : memref<1x128xf32, #tpu.memory_space<vmem>>, vector<1x128xf32>
      %c0_15 = arith.constant 0 : index
      %c0_16 = arith.constant 0 : index
      %18 = vector.load %arg8[%c0_15, %c0_16] : memref<1x128xf32, #tpu.memory_space<vmem>>, vector<1x128xf32>
      %c0_17 = arith.constant 0 : index
      %c0_18 = arith.constant 0 : index
      %19 = vector.load %arg9[%c0_17, %c0_18] : memref<1x128xf32, #tpu.memory_space<vmem>>, vector<1x128xf32>
      %20 = arith.mulf %19, %17 : vector<1x128xf32>
      %21 = arith.addf %18, %20 : vector<1x128xf32>
      %c0_19 = arith.constant 0 : index
      %c0_20 = arith.constant 0 : index
      %22 = vector.load %arg11[%c0_19, %c0_20] : memref<8x128xf32, #tpu.memory_space<vmem>>, vector<8x128xf32>
      %c0_21 = arith.constant 0 : index
      %c0_22 = arith.constant 0 : index
      %23 = vector.load %arg12[%c0_21, %c0_22] : memref<8x128xf32, #tpu.memory_space<vmem>>, vector<8x128xf32>
      %24 = vector.broadcast %17 : vector<1x128xf32> to vector<8x128xf32>
      %25 = arith.mulf %23, %24 : vector<8x128xf32>
      %26 = arith.addf %22, %25 : vector<8x128xf32>
      %27 = vector.broadcast %21 : vector<1x128xf32> to vector<8x128xf32>
      %28 = arith.addf %26, %27 : vector<8x128xf32>
      %c0_23 = arith.constant 0 : index
      %c0_24 = arith.constant 0 : index
      %29 = vector.load %arg10[%c0_23, %c0_24] : memref<8x128xf32, #tpu.memory_space<vmem>>, vector<8x128xf32>
      tpu.vector_store %arg10[%c0_23, %c0_24], %28 {strides = array<i32>} : memref<8x128xf32, #tpu.memory_space<vmem>>, vector<8x128xf32>,
    } else {
    }
    return
  }
  func.func @transform_0(%arg0: i32, %arg1: i32, %arg2: i32) -> (i32, i32) {
    %c0_i32 = arith.constant 0 : i32
    return %arg0, %arg2 : i32, i32
  }
  func.func @transform_1(%arg0: i32, %arg1: i32, %arg2: i32) -> (i32, i32) {
    %c0_i32 = arith.constant 0 : i32
    return %arg2, %arg1 : i32, i32
  }
  func.func @transform_2(%arg0: i32, %arg1: i32, %arg2: i32) -> (i32, i32) {
    %c0_i32 = arith.constant 0 : i32
    return %arg2, %arg1 : i32, i32
  }
  func.func @transform_3(%arg0: i32, %arg1: i32, %arg2: i32) -> (i32, i32) {
    %c0_i32 = arith.constant 0 : i32
    %c0_i32_0 = arith.constant 0 : i32
    return %c0_i32, %arg2 : i32, i32
  }
  func.func @transform_4(%arg0: i32, %arg1: i32, %arg2: i32) -> (i32, i32) {
    %c0_i32 = arith.constant 0 : i32
    %c0_i32_0 = arith.constant 0 : i32
    return %c0_i32, %arg1 : i32, i32
  }
  func.func @transform_5(%arg0: i32, %arg1: i32, %arg2: i32) -> (i32, i32) {
    %c0_i32 = arith.constant 0 : i32
    %c0_i32_0 = arith.constant 0 : i32
    return %c0_i32, %arg1 : i32, i32
  }
  func.func @transform_6(%arg0: i32, %arg1: i32, %arg2: i32) -> (i32, i32) {
    %c0_i32 = arith.constant 0 : i32
    %c0_i32_0 = arith.constant 0 : i32
    return %c0_i32, %arg1 : i32, i32
  }
  func.func @transform_7(%arg0: i32, %arg1: i32, %arg2: i32) -> (i32, i32) {
    %c0_i32 = arith.constant 0 : i32
    return %arg0, %arg1 : i32, i32
  }
}

</mosaic_0001>

<llo_original>
// kernel: tpu_custom_call.1
$region0: #{tpu_custom_call.1}
  #allocation0 [shape = 'u32[]', space=smem, size = 0x4, offset = 0x4, fixed_abs, tag = 'smem constant byte address 0x4 - core index']
  #allocation1 [shape = 'u32[144,128]{1,0:T(1,128)}', space=vmem, size = 0x12000, scoped, tag = 'internal scratch']
  #allocation2 [shape = 'f32[8,128]{1,0:T(8,128)}', space=vmem, size = 0x1000, scoped, tag = 'scratch operand']
  #allocation3 [shape = 'f32[8,128]{1,0:T(8,128)}', space=vmem, size = 0x1000, scoped, tag = 'scratch operand']
  %s0 = inlined_call_operand.hbm [shape: f32[8,128], index: 0, kind: input, shape index: {}]
  %s1 = inlined_call_operand.hbm [shape: f32[128,128], index: 1, kind: input, shape index: {}]
  %s2 = inlined_call_operand.hbm [shape: f32[128,128], index: 2, kind: input, shape index: {}]
  %s3 = inlined_call_operand.vmem [shape: f32[1,128], index: 3, kind: input, shape index: {}]
  %s4 = inlined_call_operand.vmem [shape: f32[1,128], index: 4, kind: input, shape index: {}]
  %s5 = inlined_call_operand.vmem [shape: f32[1,128], index: 5, kind: input, shape index: {}]
  %s6 = inlined_call_operand.vmem [shape: f32[1,128], index: 6, kind: input, shape index: {}]
  %s7 = inlined_call_operand.hbm [shape: f32[8,128], index: 7, kind: output, shape index: {}]
  %s8 = sld [smem:[#allocation0]]
  $region62: #{tpu_custom_call.1} parent=0
    _
  %s10 = ssub.s32 1, %s8
  %s11 = scalar_select 0, %s10, %s8
  $region1: #{tpu_custom_call.1} parent=0
    #allocation4 [shape = 'u8[4096]{0}', space=vmem, size = 0x1000, scoped, tag = 'input window, operand 0, single buffered']
    #allocation5 [shape = 's32[1]{0}', space=sflag, size = 0x4, scoped, tag = 'scoped memory for tpu_custom_call.1']
    #allocation6 [shape = 's32[1]{0}', space=sflag, size = 0x4, scoped, tag = 'scoped memory for tpu_custom_call.1']
    #allocation7 [shape = 'u8[65536]{0}', space=vmem, size = 0x10000, scoped, tag = 'input window, operand 1, single buffered']
    #allocation8 [shape = 's32[1]{0}', space=sflag, size = 0x4, scoped, tag = 'scoped memory for tpu_custom_call.1']
    #allocation9 [shape = 'u8[65536]{0}', space=vmem, size = 0x10000, scoped, tag = 'input window, operand 2, single buffered']
    #allocation10 [shape = 'u8[4096]{0}', space=vmem, size = 0x1000, scoped, tag = 'output window, operand 0, single buffered']
    %12 = vsyncpa [#allocation5], 0
    %13 = vsyncpa [#allocation8], 0
    %14 = vsyncpa [#allocation6], 0
    // Predicated region
    $region2: #{tpu_custom_call.1} parent=1 // pred_check
      _
    $region3: #{tpu_custom_call.1} parent=1 // pred_check_branch
      %16 = sbr.rel (0) target = $region5
    $region4: #{tpu_custom_call.1} parent=1 // pred_region
      %s18 = ssub.s32 128, 128
      %19 = vsyncadd [#allocation5], %s18
      %s21 = sshll.u32 [#allocation4], 4
      %s22 = int_to_ptr.vmem [resolvable:$true] %s21
      %24 = dma.hbm_to_vmem [thread:$0]  %s0, 128, %s22, [#allocation5]
    $region5: #{tpu_custom_call.1} parent=1 // pred_fallthru
      _
    // Predicated region
    $region6: #{tpu_custom_call.1} parent=1 // pred_check
      _
    $region7: #{tpu_custom_call.1} parent=1 // pred_check_branch
      %26 = sbr.rel (0) target = $region9
    $region8: #{tpu_custom_call.1} parent=1 // pred_region
      %s28 = ssub.s32 2048, 2048
      %29 = vsyncadd [#allocation8], %s28
      %s30 = sshll.u32 [#allocation7], 4
      %s31 = int_to_ptr.vmem [resolvable:$true] %s30
      %36 = dma.hbm_to_vmem [thread:$0]  %s1, 2048, %s31, [#allocation8], 128, 128, 8
    $region9: #{tpu_custom_call.1} parent=1 // pred_fallthru
      _
    // Predicated region
    $region10: #{tpu_custom_call.1} parent=1 // pred_check
      _
    $region11: #{tpu_custom_call.1} parent=1 // pred_check_branch
      %38 = sbr.rel (0) target = $region13
    $region12: #{tpu_custom_call.1} parent=1 // pred_region
      %s40 = ssub.s32 2048, 2048
      %41 = vsyncadd [#allocation8], %s40
      %s42 = sshll.u32 [#allocation9], 4
      %s43 = int_to_ptr.vmem [resolvable:$true] %s42
      %48 = dma.hbm_to_vmem [thread:$0]  %s2, 2048, %s43, [#allocation8], 128, 128, 8
    $region13: #{tpu_custom_call.1} parent=1 // pred_fallthru
      _
    // Predicated region
    $region14: #{tpu_custom_call.1} parent=1 // pred_check
      _
    $region15: #{tpu_custom_call.1} parent=1 // pred_check_branch
      %50 = sbr.rel (0) target = $region17
    $region16: #{tpu_custom_call.1} parent=1 // pred_region
      _
    $region17: #{tpu_custom_call.1} parent=1 // pred_fallthru
      _
    // Predicated region
    $region18: #{tpu_custom_call.1} parent=1 // pred_check
      _
    $region19: #{tpu_custom_call.1} parent=1 // pred_check_branch
      %52 = sbr.rel (0) target = $region21
    $region20: #{tpu_custom_call.1} parent=1 // pred_region
      _
    $region21: #{tpu_custom_call.1} parent=1 // pred_fallthru
      _
    // Predicated region
    $region22: #{tpu_custom_call.1} parent=1 // pred_check
      _
    $region23: #{tpu_custom_call.1} parent=1 // pred_check_branch
      %54 = sbr.rel (0) target = $region25
    $region24: #{tpu_custom_call.1} parent=1 // pred_region
      _
    $region25: #{tpu_custom_call.1} parent=1 // pred_fallthru
      _
    // Predicated region
    $region26: #{tpu_custom_call.1} parent=1 // pred_check
      _
    $region27: #{tpu_custom_call.1} parent=1 // pred_check_branch
      %56 = sbr.rel (0) target = $region29
    $region28: #{tpu_custom_call.1} parent=1 // pred_region
      _
    $region29: #{tpu_custom_call.1} parent=1 // pred_fallthru
      _
    // Predicated region
    $region30: #{tpu_custom_call.1} parent=1 // pred_check
      _
    $region31: #{tpu_custom_call.1} parent=1 // pred_check_branch
      %58 = sbr.rel (0) target = $region33
    $region32: #{tpu_custom_call.1} parent=1 // pred_region
      %59 = dma.done [#allocation5], 128
    $region33: #{tpu_custom_call.1} parent=1 // pred_fallthru
      _
    // Predicated region
    $region34: #{tpu_custom_call.1} parent=1 // pred_check
      _
    $region35: #{tpu_custom_call.1} parent=1 // pred_check_branch
      %61 = sbr.rel (0) target = $region37
    $region36: #{tpu_custom_call.1} parent=1 // pred_region
      %62 = dma.done [#allocation8], 2048
    $region37: #{tpu_custom_call.1} parent=1 // pred_fallthru
      _
    // Predicated region
    $region38: #{tpu_custom_call.1} parent=1 // pred_check
      _
    $region39: #{tpu_custom_call.1} parent=1 // pred_check_branch
      %64 = sbr.rel (0) target = $region41
    $region40: #{tpu_custom_call.1} parent=1 // pred_region
      %65 = dma.done [#allocation8], 2048
    $region41: #{tpu_custom_call.1} parent=1 // pred_fallthru
      _
    %v66 = vld [vmem:[#allocation4] sm:$0xff]
    %v67 = vld [vmem:[%s3] sm:$0x1]
    %v68 = vld [vmem:[#allocation7] sm:$0xff]
    %v69 = vld [vmem:[#allocation7 + $0x8] sm:$0xff]
    %v70 = vld [vmem:[#allocation7 + $0x10] sm:$0xff]
    %v71 = vld [vmem:[#allocation7 + $0x18] sm:$0xff]
    %v72 = vld [vmem:[#allocation7 + $0x20] sm:$0xff]
    %v73 = vld [vmem:[#allocation7 + $0x28] sm:$0xff]
    %v74 = vld [vmem:[#allocation7 + $0x30] sm:$0xff]
    %v75 = vld [vmem:[#allocation7 + $0x38] sm:$0xff]
    %v76 = vld [vmem:[#allocation7 + $0x40] sm:$0xff]
    %v77 = vld [vmem:[#allocation7 + $0x48] sm:$0xff]
    %v78 = vld [vmem:[#allocation7 + $0x50] sm:$0xff]
    %v79 = vld [vmem:[#allocation7 + $0x58] sm:$0xff]
    %v80 = vld [vmem:[#allocation7 + $0x60] sm:$0xff]
    %v81 = vld [vmem:[#allocation7 + $0x68] sm:$0xff]
    %v82 = vld [vmem:[#allocation7 + $0x70] sm:$0xff]
    %v83 = vld [vmem:[#allocation7 + $0x78] sm:$0xff]
    %84 = vmatprep.subr.mxu0 0.0
    %85 = vmatpush1.msra.mxu0 %v83
    %86 = vmatprep.subr.mxu0 0.0
    %87 = vmatpush1.msra.mxu0 %v82
    %88 = vmatprep.subr.mxu0 0.0
    %89 = vmatpush1.msra.mxu0 %v81
    %90 = vmatprep.subr.mxu0 0.0
    %91 = vmatpush1.msra.mxu0 %v80
    %92 = vmatprep.subr.mxu0 0.0
    %93 = vmatpush1.msra.mxu0 %v79
    %94 = vmatprep.subr.mxu0 0.0
    %95 = vmatpush1.msra.mxu0 %v78
    %96 = vmatprep.subr.mxu0 0.0
    %97 = vmatpush1.msra.mxu0 %v77
    %98 = vmatprep.subr.mxu0 0.0
    %99 = vmatpush1.msra.mxu0 %v76
    %100 = vmatprep.subr.mxu0 0.0
    %101 = vmatpush1.msra.mxu0 %v75
    %102 = vmatprep.subr.mxu0 0.0
    %103 = vmatpush1.msra.mxu0 %v74
    %104 = vmatprep.subr.mxu0 0.0
    %105 = vmatpush1.msra.mxu0 %v73
    %106 = vmatprep.subr.mxu0 0.0
    %107 = vmatpush1.msra.mxu0 %v72
    %108 = vmatprep.subr.mxu0 0.0
    %109 = vmatpush1.msra.mxu0 %v71
    %110 = vmatprep.subr.mxu0 0.0
    %111 = vmatpush1.msra.mxu0 %v70
    %112 = vmatprep.subr.mxu0 0.0
    %113 = vmatpush1.msra.mxu0 %v69
    %114 = vmatprep.subr.mxu0 0.0
    %115 = vmatpush1.msra.mxu0 %v68
    %116 = vmatprep.subr.mxu0 0.0
    %117 = vmatpush2.msra.mxu0 0.0
    %118 = vmatprep.subr.mxu0 0.0
    %119 = vmatpush2.msra.mxu0 0.0
    %120 = vmatprep.subr.mxu0 0.0
    %121 = vmatpush2.msra.mxu0 0.0
    %122 = vmatprep.subr.mxu0 0.0
    %123 = vmatpush2.msra.mxu0 0.0
    %124 = vmatprep.subr.mxu0 0.0
    %125 = vmatpush2.msra.mxu0 0.0
    %126 = vmatprep.subr.mxu0 0.0
    %127 = vmatpush2.msra.mxu0 0.0
    %128 = vmatprep.subr.mxu0 0.0
    %129 = vmatpush2.msra.mxu0 0.0
    %130 = vmatprep.subr.mxu0 0.0
    %131 = vmatpush2.msra.mxu0 0.0
    %132 = vmatprep.subr.mxu0 0.0
    %133 = vmatpush2.msra.mxu0 0.0
    %134 = vmatprep.subr.mxu0 0.0
    %135 = vmatpush2.msra.mxu0 0.0
    %136 = vmatprep.subr.mxu0 0.0
    %137 = vmatpush2.msra.mxu0 0.0
    %138 = vmatprep.subr.mxu0 0.0
    %139 = vmatpush2.msra.mxu0 0.0
    %140 = vmatprep.subr.mxu0 0.0
    %141 = vmatpush2.msra.mxu0 0.0
    %142 = vmatprep.subr.mxu0 0.0
    %143 = vmatpush2.msra.mxu0 0.0
    %144 = vmatprep.subr.mxu0 0.0
    %145 = vmatpush2.msra.mxu0 0.0
    %146 = vmatprep.subr.mxu0 0.0
    %147 = vmatpush2.msra.mxu0 0.0
    %148 = vmatprep.mubr.f32.mxu0 0.0
    %149 = vmatmul.mubr.f32.gmra.mxu0 %v66
    %v150 = vpop.f32.mrf.mxu0
    %v151 = vadd.f32 0.0, %v150
    %v152 = vpop.f32.mrf.mxu0
    %153 = vdwg.mxu0
    %v155 = vlaneseq
    %v156 = vshrl.u32 %v155, 7
    %v157 = vsub.s32 0, %v156
    %v158 = vrot.slane %v67, %v157
    %v160 = vmul.f32 %v66, %v158
    %v161 = vld [vmem:[#allocation9] sm:$0xff]
    %v162 = vld [vmem:[#allocation9 + $0x8] sm:$0xff]
    %v163 = vld [vmem:[#allocation9 + $0x10] sm:$0xff]
    %v164 = vld [vmem:[#allocation9 + $0x18] sm:$0xff]
    %v165 = vld [vmem:[#allocation9 + $0x20] sm:$0xff]
    %v166 = vld [vmem:[#allocation9 + $0x28] sm:$0xff]
    %v167 = vld [vmem:[#allocation9 + $0x30] sm:$0xff]
    %v168 = vld [vmem:[#allocation9 + $0x38] sm:$0xff]
    %v169 = vld [vmem:[#allocation9 + $0x40] sm:$0xff]
    %v170 = vld [vmem:[#allocation9 + $0x48] sm:$0xff]
    %v171 = vld [vmem:[#allocation9 + $0x50] sm:$0xff]
    %v172 = vld [vmem:[#allocation9 + $0x58] sm:$0xff]
    %v173 = vld [vmem:[#allocation9 + $0x60] sm:$0xff]
    %v174 = vld [vmem:[#allocation9 + $0x68] sm:$0xff]
    %v175 = vld [vmem:[#allocation9 + $0x70] sm:$0xff]
    %v176 = vld [vmem:[#allocation9 + $0x78] sm:$0xff]
    %177 = vmatprep.subr.mxu0 0.0
    %178 = vmatpush1.msra.mxu0 %v176
    %179 = vmatprep.subr.mxu0 0.0
    %180 = vmatpush1.msra.mxu0 %v175
    %181 = vmatprep.subr.mxu0 0.0
    %182 = vmatpush1.msra.mxu0 %v174
    %183 = vmatprep.subr.mxu0 0.0
    %184 = vmatpush1.msra.mxu0 %v173
    %185 = vmatprep.subr.mxu0 0.0
    %186 = vmatpush1.msra.mxu0 %v172
    %187 = vmatprep.subr.mxu0 0.0
    %188 = vmatpush1.msra.mxu0 %v171
    %189 = vmatprep.subr.mxu0 0.0
    %190 = vmatpush1.msra.mxu0 %v170
    %191 = vmatprep.subr.mxu0 0.0
    %192 = vmatpush1.msra.mxu0 %v169
    %193 = vmatprep.subr.mxu0 0.0
    %194 = vmatpush1.msra.mxu0 %v168
    %195 = vmatprep.subr.mxu0 0.0
    %196 = vmatpush1.msra.mxu0 %v167
    %197 = vmatprep.subr.mxu0 0.0
    %198 = vmatpush1.msra.mxu0 %v166
    %199 = vmatprep.subr.mxu0 0.0
    %200 = vmatpush1.msra.mxu0 %v165
    %201 = vmatprep.subr.mxu0 0.0
    %202 = vmatpush1.msra.mxu0 %v164
    %203 = vmatprep.subr.mxu0 0.0
    %204 = vmatpush1.msra.mxu0 %v163
    %205 = vmatprep.subr.mxu0 0.0
    %206 = vmatpush1.msra.mxu0 %v162
    %207 = vmatprep.subr.mxu0 0.0
    %208 = vmatpush1.msra.mxu0 %v161
    %209 = vmatprep.subr.mxu0 0.0
    %210 = vmatpush2.msra.mxu0 0.0
    %211 = vmatprep.subr.mxu0 0.0
    %212 = vmatpush2.msra.mxu0 0.0
    %213 = vmatprep.subr.mxu0 0.0
    %214 = vmatpush2.msra.mxu0 0.0
    %215 = vmatprep.subr.mxu0 0.0
    %216 = vmatpush2.msra.mxu0 0.0
    %217 = vmatprep.subr.mxu0 0.0
    %218 = vmatpush2.msra.mxu0 0.0
    %219 = vmatprep.subr.mxu0 0.0
    %220 = vmatpush2.msra.mxu0 0.0
    %221 = vmatprep.subr.mxu0 0.0
    %222 = vmatpush2.msra.mxu0 0.0
    %223 = vmatprep.subr.mxu0 0.0
    %224 = vmatpush2.msra.mxu0 0.0
    %225 = vmatprep.subr.mxu0 0.0
    %226 = vmatpush2.msra.mxu0 0.0
    %227 = vmatprep.subr.mxu0 0.0
    %228 = vmatpush2.msra.mxu0 0.0
    %229 = vmatprep.subr.mxu0 0.0
    %230 = vmatpush2.msra.mxu0 0.0
    %231 = vmatprep.subr.mxu0 0.0
    %232 = vmatpush2.msra.mxu0 0.0
    %233 = vmatprep.subr.mxu0 0.0
    %234 = vmatpush2.msra.mxu0 0.0
    %235 = vmatprep.subr.mxu0 0.0
    %236 = vmatpush2.msra.mxu0 0.0
    %237 = vmatprep.subr.mxu0 0.0
    %238 = vmatpush2.msra.mxu0 0.0
    %239 = vmatprep.subr.mxu0 0.0
    %240 = vmatpush2.msra.mxu0 0.0
    %241 = vmatprep.mubr.f32.mxu0 0.0
    %242 = vmatmul.mubr.f32.gmra.mxu0 %v160
    %v243 = vpop.f32.mrf.mxu0
    %v244 = vadd.f32 0.0, %v243
    %v245 = vpop.f32.mrf.mxu0
    %246 = vdwg.mxu0
    %p247 = scmp.eq.s32.totalorder 0, 0
    // Predicated region
    $region42: #{tpu_custom_call.1} parent=1 // pred_check
      %p248 = pneg %p247
    $region43: #{tpu_custom_call.1} parent=1 // pred_check_branch
      %250 = sbr.rel (%p248) target = $region45
    $region44: #{tpu_custom_call.1} parent=1 // pred_region
      %251 = vst [vmem:[#allocation2] sm:$0xff] %v151
      %252 = vst [vmem:[#allocation3] sm:$0xff] %v244
    $region45: #{tpu_custom_call.1} parent=1 // pred_fallthru
      _
    %p253 = scmp.gt.s32.totalorder 0, 0
    // Predicated region
    $region46: #{tpu_custom_call.1} parent=1 // pred_check
      %p254 = pneg %p253
    $region47: #{tpu_custom_call.1} parent=1 // pred_check_branch
      %256 = sbr.rel (%p254) target = $region49
    $region48: #{tpu_custom_call.1} parent=1 // pred_region
      %v257 = vld [vmem:[#allocation2] sm:$0xff]
      %v258 = vadd.f32 %v257, %v151
      %259 = vst [vmem:[#allocation2] sm:$0xff] %v258
      %v260 = vld [vmem:[#allocation3] sm:$0xff]
      %v261 = vadd.f32 %v260, %v244
      %262 = vst [vmem:[#allocation3] sm:$0xff] %v261
    $region49: #{tpu_custom_call.1} parent=1 // pred_fallthru
      _
    // Predicated region
    $region50: #{tpu_custom_call.1} parent=1 // pred_check
      %p263 = pneg %p247
    $region51: #{tpu_custom_call.1} parent=1 // pred_check_branch
      %265 = sbr.rel (%p263) target = $region53
    $region52: #{tpu_custom_call.1} parent=1 // pred_region
      %v266 = vld [vmem:[%s4] sm:$0x1]
      %v267 = vld [vmem:[%s5] sm:$0x1]
      %v268 = vld [vmem:[%s6] sm:$0x1]
      %v269 = vmul.f32 %v268, %v266
      %v270 = vadd.f32 %v267, %v269
      %v271 = vld [vmem:[#allocation2] sm:$0xff]
      %v272 = vld [vmem:[#allocation3] sm:$0xff]
      %v274 = vlaneseq
      %v275 = vshrl.u32 %v274, 7
      %v276 = vsub.s32 0, %v275
      %v277 = vrot.slane %v266, %v276
      %v279 = vmul.f32 %v272, %v277
      %v280 = vadd.f32 %v271, %v279
      %v282 = vlaneseq
      %v283 = vshrl.u32 %v282, 7
      %v284 = vsub.s32 0, %v283
      %v285 = vrot.slane %v270, %v284
      %v287 = vadd.f32 %v280, %v285
      %288 = vst [vmem:[#allocation10] sm:$0xff] %v287
    $region53: #{tpu_custom_call.1} parent=1 // pred_fallthru
      _
    // Predicated region
    $region54: #{tpu_custom_call.1} parent=1 // pred_check
      _
    $region55: #{tpu_custom_call.1} parent=1 // pred_check_branch
      %290 = sbr.rel (0) target = $region57
    $region56: #{tpu_custom_call.1} parent=1 // pred_region
      %s292 = ssub.s32 128, 128
      %293 = vsyncadd [#allocation6], %s292
      %s295 = sshll.u32 [#allocation10], 4
      %s296 = int_to_ptr.vmem [resolvable:$true] %s295
      %298 = dma.vmem_to_hbm [thread:$0]  %s296, 128, %s7, [#allocation6]
    $region57: #{tpu_custom_call.1} parent=1 // pred_fallthru
      _
    // Predicated region
    $region58: #{tpu_custom_call.1} parent=1 // pred_check
      _
    $region59: #{tpu_custom_call.1} parent=1 // pred_check_branch
      %300 = sbr.rel (0) target = $region61
    $region60: #{tpu_custom_call.1} parent=1 // pred_region
      %301 = dma.done [#allocation6], 128
    $region61: #{tpu_custom_call.1} parent=1 // pred_fallthru
      _
    %302 = vsyncpa [#allocation5], 1
    %303 = vsyncpa [#allocation8], 1
    %304 = vsyncpa [#allocation6], 1

</llo_original>
